<compile_context>
chip_gen: v6e
topology: v6e:2x2x1
jax: 0.10.0
libtpu: 0.0.40
codegen_flags: <defaults>
</compile_context>

<pallas_src>
import jax
import jax.numpy as jnp
from jax.experimental import pallas as pl
from jax.experimental.pallas import tpu as pltpu


def _round_up(a, m):
    return ((a + m - 1) // m) * m


def _score_kernel(x_ref, w1_ref, b1_ref, w2_ref, b2_ref, w2ts_ref, w1t_ref,
                  o_ref):
    # x tile: (tile_rows, pack*D); weights are full, VMEM-resident blocks.
    x = x_ref[...]                                   # matmul dtype (bf16 or f32)

    # ---- forward: E(x) = w3 . tanh(W2 tanh(W1 x + b1) + b2) + b3
    # (b3 never influences the gradient; w3 is folded into w2ts below)
    z1 = jnp.dot(x, w1_ref[...], preferred_element_type=jnp.float32) + b1_ref[...]
    h1 = jnp.tanh(z1)                                # f32 elementwise (v5e-safe)
    z2 = jnp.dot(h1.astype(w2_ref.dtype), w2_ref[...],
                 preferred_element_type=jnp.float32) + b2_ref[...]
    h2 = jnp.tanh(z2)

    # ---- manual backprop of sum(E) w.r.t. x
    # w2ts = diag(w3) @ W2^T, so g1 = ((1 - h2^2) @ w2ts) * (1 - h1^2)
    t2 = 1.0 - h2 * h2
    g1 = jnp.dot(t2.astype(w2ts_ref.dtype), w2ts_ref[...],
                 preferred_element_type=jnp.float32) * (1.0 - h1 * h1)
    gx = jnp.dot(g1.astype(w1t_ref.dtype), w1t_ref[...],
                 preferred_element_type=jnp.float32)

    # score = grad_x(-E) = -grad_x(E)
    o_ref[...] = (-gx).astype(o_ref.dtype)


def energy_score(x, params, *, max_tile_rows=128, matmul_dtype=jnp.bfloat16):
    """score(x) = d/dx [ -E(x) ], same shape as x.

    matmul_dtype: dtype of MXU operands (bf16 default; pass jnp.float32 for an
    exact-to-autodiff path).  Elementwise math is always f32.
    """
    w1, b1, w2, b2, w3, b3 = params
    orig_shape = x.shape
    D = orig_shape[-1]
    H = w1.shape[1]
    x2 = x.reshape(-1, D)
    B = x2.shape[0]

    # ---- lane packing: `pack` consecutive rows become one lane-dense row.
    pack = max(1, 128 // max(D, H))
    rows = pl.cdiv(B, pack)
    rows8 = _round_up(max(rows, 1), 8)
    tile_rows = min(max_tile_rows, rows8)
    # Prefer >=2 grid steps when there is enough work so the single "parallel"
    # axis shards across both TensorCores on v7x.
    if rows8 > 8 and pl.cdiv(rows8, tile_rows) < 2:
        tile_rows = _round_up(pl.cdiv(rows8, 2), 8)
    grid_m = pl.cdiv(rows8, tile_rows)
    rows_total = grid_m * tile_rows
    B_pad = rows_total * pack

    if B_pad != B:
        x2 = jnp.pad(x2, ((0, B_pad - B), (0, 0)))
    x2p = x2.reshape(rows_total, pack * D).astype(matmul_dtype)

    # ---- block-diagonal weights, built once outside the kernel.
    eye = jnp.eye(pack, dtype=jnp.float32)
    w1f, w2f, w3f = w1.astype(jnp.float32), w2.astype(jnp.float32), w3.astype(jnp.float32)
    w1_blk   = jnp.kron(eye, w1f).astype(matmul_dtype)                 # (pack*D, pack*H)
    w2_blk   = jnp.kron(eye, w2f).astype(matmul_dtype)                 # (pack*H, pack*H)
    w2ts     = w3f.reshape(H, 1) * jnp.transpose(w2f)                  # diag(w3) @ W2^T
    w2ts_blk = jnp.kron(eye, w2ts).astype(matmul_dtype)                # (pack*H, pack*H)
    w1t_blk  = jnp.kron(eye, jnp.transpose(w1f)).astype(matmul_dtype)  # (pack*H, pack*D)
    b1_blk = jnp.tile(b1.reshape(1, H).astype(jnp.float32), (1, pack))  # (1, pack*H)
    b2_blk = jnp.tile(b2.reshape(1, H).astype(jnp.float32), (1, pack))

    pD, pH = pack * D, pack * H
    mm_bytes = jnp.dtype(matmul_dtype).itemsize
    weight_bytes = (w1_blk.size + w2_blk.size + w2ts_blk.size + w1t_blk.size) * mm_bytes
    cost = pl.CostEstimate(
        flops=4 * rows_total * pH * (pD + pH),             # 4 matmuls (z1,z2,g1,gx)
        transcendentals=2 * rows_total * pH,               # two tanh layers
        bytes_accessed=rows_total * pD * (mm_bytes + jnp.dtype(x.dtype).itemsize)
                       + weight_bytes,
    )

    out = pl.pallas_call(
        _score_kernel,
        out_shape=jax.ShapeDtypeStruct((rows_total, pD), x.dtype),
        grid_spec=pltpu.PrefetchScalarGridSpec(
            num_scalar_prefetch=0,
            grid=(grid_m,),
            in_specs=[
                pl.BlockSpec((tile_rows, pD), lambda i: (i, 0)),  # packed x tile
                pl.BlockSpec((pD, pH), lambda i: (0, 0)),         # W1   (block-diag)
                pl.BlockSpec((1, pH), lambda i: (0, 0)),          # b1   (tiled)
                pl.BlockSpec((pH, pH), lambda i: (0, 0)),         # W2   (block-diag)
                pl.BlockSpec((1, pH), lambda i: (0, 0)),          # b2   (tiled)
                pl.BlockSpec((pH, pH), lambda i: (0, 0)),         # diag(w3)@W2^T
                pl.BlockSpec((pH, pD), lambda i: (0, 0)),         # W1^T (block-diag)
            ],
            out_specs=pl.BlockSpec((tile_rows, pD), lambda i: (i, 0)),
        ),
        compiler_params=pltpu.CompilerParams(
            dimension_semantics=("parallel",)),
        cost_estimate=cost,
    )(x2p, w1_blk, b1_blk, w2_blk, b2_blk, w2ts_blk, w1t_blk)

    out = out.reshape(B_pad, D)
    if B_pad != B:
        out = out[:B]
    return out.reshape(orig_shape)


def init_params(key, dim, hidden):
    k1, k2, k3 = jax.random.split(key, 3)
    w1 = jax.random.normal(k1, (dim, hidden), jnp.float32) * 0.2
    b1 = jnp.linspace(-0.1, 0.1, hidden, dtype=jnp.float32)
    w2 = jax.random.normal(k2, (hidden, hidden), jnp.float32) * 0.2
    b2 = jnp.linspace(0.1, -0.1, hidden, dtype=jnp.float32)
    w3 = jax.random.normal(k3, (hidden, 1), jnp.float32) * 0.2
    b3 = jnp.zeros((1,), jnp.float32)
    return (w1, b1, w2, b2, w3, b3)


def _energy_ref(x2, params):
    w1, b1, w2, b2, w3, b3 = params
    h1 = jnp.tanh(x2 @ w1 + b1)
    h2 = jnp.tanh(h1 @ w2 + b2)
    return h2 @ w3 + b3  # (B, 1)


def _score_ref(x, params):
    shape = x.shape
    x2 = x.reshape(-1, shape[-1])
    g = jax.grad(lambda xx: -jnp.sum(_energy_ref(xx, params)))(x2)
    return g.reshape(shape)


# TODO(synk): save()/load() (torch.save/state_dict file I/O) have no Pallas
# equivalent and are intentionally not implemented.

if __name__ == "__main__":
    key = jax.random.PRNGKey(0)
    kx, kp = jax.random.split(key)

    dim, hidden = 32, 32
    x = jax.random.normal(kx, (2, 8, dim), jnp.float32)   # [..., dim]
    params = init_params(kp, dim, hidden)
    ref = _score_ref(x, params)

    # default (bf16 MXU operands, f32 accumulation / elementwise)
    score = jax.block_until_ready(energy_score(x, params))
    assert score.shape == x.shape
    assert jnp.allclose(score, ref, atol=1e-2, rtol=5e-2)

    # exact f32 path matches autodiff tightly
    score_f32 = jax.block_until_ready(
        energy_score(x, params, matmul_dtype=jnp.float32))
    assert jnp.allclose(score_f32, ref, atol=1e-5, rtol=1e-4)

    # batch that is not a multiple of the pack/tile size (exercises padding)
    x_odd = jax.random.normal(kx, (3, 7, dim), jnp.float32)
    score_odd = jax.block_until_ready(energy_score(x_odd, params))
    assert score_odd.shape == x_odd.shape
    assert jnp.allclose(score_odd, _score_ref(x_odd, params), atol=1e-2, rtol=5e-2)

    print("KERNEL_OK")
</pallas_src>

<mosaic_0001>
module attributes {stable_mosaic.version = 11 : i64} {
  func.func @_score_kernel(%arg0: i32, %arg1: memref<8x128xbf16, #tpu.memory_space<vmem>>, %arg2: memref<128x128xbf16, #tpu.memory_space<vmem>>, %arg3: memref<1x128xf32, #tpu.memory_space<vmem>>, %arg4: memref<128x128xbf16, #tpu.memory_space<vmem>>, %arg5: memref<1x128xf32, #tpu.memory_space<vmem>>, %arg6: memref<128x128xbf16, #tpu.memory_space<vmem>>, %arg7: memref<128x128xbf16, #tpu.memory_space<vmem>>, %arg8: memref<8x128xf32, #tpu.memory_space<vmem>>) attributes {dimension_semantics = [#tpu.dimension_semantics<parallel>], iteration_bounds = array<i64: 1>, scalar_prefetch = 0 : i64, scratch_operands = 0 : i64, tpu.core_type = #tpu.core_type<tc>, window_params = [{transform_indices = @transform_0, window_bounds = array<i64: 8, 128>}, {pipeline_mode = #tpu.pipeline_mode<synchronous>, transform_indices = @transform_1, window_bounds = array<i64: 128, 128>}, {pipeline_mode = #tpu.pipeline_mode<synchronous>, transform_indices = @transform_2, window_bounds = array<i64: 1, 128>}, {pipeline_mode = #tpu.pipeline_mode<synchronous>, transform_indices = @transform_3, window_bounds = array<i64: 128, 128>}, {pipeline_mode = #tpu.pipeline_mode<synchronous>, transform_indices = @transform_4, window_bounds = array<i64: 1, 128>}, {pipeline_mode = #tpu.pipeline_mode<synchronous>, transform_indices = @transform_5, window_bounds = array<i64: 128, 128>}, {pipeline_mode = #tpu.pipeline_mode<synchronous>, transform_indices = @transform_6, window_bounds = array<i64: 128, 128>}, {transform_indices = @transform_7, window_bounds = array<i64: 8, 128>}]} {
    %c0 = arith.constant 0 : index
    %c0_0 = arith.constant 0 : index
    %0 = vector.load %arg1[%c0, %c0_0] : memref<8x128xbf16, #tpu.memory_space<vmem>>, vector<8x128xbf16>
    %c0_1 = arith.constant 0 : index
    %c0_2 = arith.constant 0 : index
    %1 = vector.load %arg2[%c0_1, %c0_2] : memref<128x128xbf16, #tpu.memory_space<vmem>>, vector<128x128xbf16>
    %cst = arith.constant dense<0.000000e+00> : vector<8x128xf32>
    %2 = tpu.matmul %0, %1, %cst {dimension_numbers = #tpu.dot_dimension_numbers<[1], [0], [0], [1], [0, 0, 1, 1], [], []>} : vector<8x128xbf16>, vector<128x128xbf16>, vector<8x128xf32> -> vector<8x128xf32>
    %c0_3 = arith.constant 0 : index
    %c0_4 = arith.constant 0 : index
    %3 = vector.load %arg3[%c0_3, %c0_4] : memref<1x128xf32, #tpu.memory_space<vmem>>, vector<1x128xf32>
    %4 = vector.broadcast %3 : vector<1x128xf32> to vector<8x128xf32>
    %5 = arith.addf %2, %4 : vector<8x128xf32>
    %6 = math.tanh %5 : vector<8x128xf32>
    %7 = arith.truncf %6 : vector<8x128xf32> to vector<8x128xbf16>
    %c0_5 = arith.constant 0 : index
    %c0_6 = arith.constant 0 : index
    %8 = vector.load %arg4[%c0_5, %c0_6] : memref<128x128xbf16, #tpu.memory_space<vmem>>, vector<128x128xbf16>
    %cst_7 = arith.constant dense<0.000000e+00> : vector<8x128xf32>
    %9 = tpu.matmul %7, %8, %cst_7 {dimension_numbers = #tpu.dot_dimension_numbers<[1], [0], [0], [1], [0, 0, 1, 1], [], []>} : vector<8x128xbf16>, vector<128x128xbf16>, vector<8x128xf32> -> vector<8x128xf32>
    %c0_8 = arith.constant 0 : index
    %c0_9 = arith.constant 0 : index
    %10 = vector.load %arg5[%c0_8, %c0_9] : memref<1x128xf32, #tpu.memory_space<vmem>>, vector<1x128xf32>
    %11 = vector.broadcast %10 : vector<1x128xf32> to vector<8x128xf32>
    %12 = arith.addf %9, %11 : vector<8x128xf32>
    %13 = math.tanh %12 : vector<8x128xf32>
    %14 = arith.mulf %13, %13 : vector<8x128xf32>
    %cst_10 = arith.constant 1.000000e+00 : f32
    %15 = vector.broadcast %cst_10 : f32 to vector<8x128xf32>
    %16 = arith.subf %15, %14 : vector<8x128xf32>
    %17 = arith.truncf %16 : vector<8x128xf32> to vector<8x128xbf16>
    %c0_11 = arith.constant 0 : index
    %c0_12 = arith.constant 0 : index
    %18 = vector.load %arg6[%c0_11, %c0_12] : memref<128x128xbf16, #tpu.memory_space<vmem>>, vector<128x128xbf16>
    %cst_13 = arith.constant dense<0.000000e+00> : vector<8x128xf32>
    %19 = tpu.matmul %17, %18, %cst_13 {dimension_numbers = #tpu.dot_dimension_numbers<[1], [0], [0], [1], [0, 0, 1, 1], [], []>} : vector<8x128xbf16>, vector<128x128xbf16>, vector<8x128xf32> -> vector<8x128xf32>
    %20 = arith.mulf %6, %6 : vector<8x128xf32>
    %cst_14 = arith.constant 1.000000e+00 : f32
    %21 = vector.broadcast %cst_14 : f32 to vector<8x128xf32>
    %22 = arith.subf %21, %20 : vector<8x128xf32>
    %23 = arith.mulf %19, %22 : vector<8x128xf32>
    %24 = arith.truncf %23 : vector<8x128xf32> to vector<8x128xbf16>
    %c0_15 = arith.constant 0 : index
    %c0_16 = arith.constant 0 : index
    %25 = vector.load %arg7[%c0_15, %c0_16] : memref<128x128xbf16, #tpu.memory_space<vmem>>, vector<128x128xbf16>
    %cst_17 = arith.constant dense<0.000000e+00> : vector<8x128xf32>
    %26 = tpu.matmul %24, %25, %cst_17 {dimension_numbers = #tpu.dot_dimension_numbers<[1], [0], [0], [1], [0, 0, 1, 1], [], []>} : vector<8x128xbf16>, vector<128x128xbf16>, vector<8x128xf32> -> vector<8x128xf32>
    %cst_18 = arith.constant 0.000000e+00 : f32
    %27 = vector.broadcast %cst_18 : f32 to vector<8x128xf32>
    %28 = arith.subf %27, %26 : vector<8x128xf32>
    %c0_19 = arith.constant 0 : index
    %c0_20 = arith.constant 0 : index
    %29 = vector.load %arg8[%c0_19, %c0_20] : memref<8x128xf32, #tpu.memory_space<vmem>>, vector<8x128xf32>
    tpu.vector_store %arg8[%c0_19, %c0_20], %28 {strides = array<i32>} : memref<8x128xf32, #tpu.memory_space<vmem>>, vector<8x128xf32>,
    return
  }
  func.func @transform_0(%arg0: i32) -> (i32, i32) {
    %c0_i32 = arith.constant 0 : i32
    %c0_i32_0 = arith.constant 0 : i32
    return %arg0, %c0_i32 : i32, i32
  }
  func.func @transform_1(%arg0: i32) -> (i32, i32) {
    %c0_i32 = arith.constant 0 : i32
    %c0_i32_0 = arith.constant 0 : i32
    %c0_i32_1 = arith.constant 0 : i32
    return %c0_i32, %c0_i32_0 : i32, i32
  }
  func.func @transform_2(%arg0: i32) -> (i32, i32) {
    %c0_i32 = arith.constant 0 : i32
    %c0_i32_0 = arith.constant 0 : i32
    %c0_i32_1 = arith.constant 0 : i32
    return %c0_i32, %c0_i32_0 : i32, i32
  }
  func.func @transform_3(%arg0: i32) -> (i32, i32) {
    %c0_i32 = arith.constant 0 : i32
    %c0_i32_0 = arith.constant 0 : i32
    %c0_i32_1 = arith.constant 0 : i32
    return %c0_i32, %c0_i32_0 : i32, i32
  }
  func.func @transform_4(%arg0: i32) -> (i32, i32) {
    %c0_i32 = arith.constant 0 : i32
    %c0_i32_0 = arith.constant 0 : i32
    %c0_i32_1 = arith.constant 0 : i32
    return %c0_i32, %c0_i32_0 : i32, i32
  }
  func.func @transform_5(%arg0: i32) -> (i32, i32) {
    %c0_i32 = arith.constant 0 : i32
    %c0_i32_0 = arith.constant 0 : i32
    %c0_i32_1 = arith.constant 0 : i32
    return %c0_i32, %c0_i32_0 : i32, i32
  }
  func.func @transform_6(%arg0: i32) -> (i32, i32) {
    %c0_i32 = arith.constant 0 : i32
    %c0_i32_0 = arith.constant 0 : i32
    %c0_i32_1 = arith.constant 0 : i32
    return %c0_i32, %c0_i32_0 : i32, i32
  }
  func.func @transform_7(%arg0: i32) -> (i32, i32) {
    %c0_i32 = arith.constant 0 : i32
    %c0_i32_0 = arith.constant 0 : i32
    return %arg0, %c0_i32 : i32, i32
  }
}

</mosaic_0001>

<llo_original>
// kernel: tpu_custom_call.1
$region0: #{tpu_custom_call.1}
  #allocation0 [shape = 'u32[]', space=smem, size = 0x4, offset = 0x4, fixed_abs, tag = 'smem constant byte address 0x4 - core index']
  #allocation1 [shape = 'u32[144,128]{1,0:T(1,128)}', space=vmem, size = 0x12000, scoped, tag = 'internal scratch']
  %s0 = inlined_call_operand.hbm [shape: bf16[8,128], index: 0, kind: input, shape index: {}]
  %s1 = inlined_call_operand.hbm [shape: bf16[128,128], index: 1, kind: input, shape index: {}]
  %s2 = inlined_call_operand.vmem [shape: f32[1,128], index: 2, kind: input, shape index: {}]
  %s3 = inlined_call_operand.hbm [shape: bf16[128,128], index: 3, kind: input, shape index: {}]
  %s4 = inlined_call_operand.vmem [shape: f32[1,128], index: 4, kind: input, shape index: {}]
  %s5 = inlined_call_operand.hbm [shape: bf16[128,128], index: 5, kind: input, shape index: {}]
  %s6 = inlined_call_operand.hbm [shape: bf16[128,128], index: 6, kind: input, shape index: {}]
  %s7 = inlined_call_operand.hbm [shape: f32[8,128], index: 7, kind: output, shape index: {}]
  %s8 = sld [smem:[#allocation0]]
  $region58: #{tpu_custom_call.1} parent=0
    _
  %s10 = ssub.s32 1, %s8
  %s11 = scalar_select 0, %s10, %s8
  $region1: #{tpu_custom_call.1} parent=0
    #allocation2 [shape = 'u8[2048]{0}', space=vmem, size = 0x800, scoped, tag = 'input window, operand 0, single buffered']
    #allocation3 [shape = 's32[1]{0}', space=sflag, size = 0x4, scoped, tag = 'scoped memory for tpu_custom_call.1']
    #allocation4 [shape = 's32[1]{0}', space=sflag, size = 0x4, scoped, tag = 'scoped memory for tpu_custom_call.1']
    #allocation5 [shape = 'u8[32768]{0}', space=vmem, size = 0x8000, scoped, tag = 'input window, operand 1, single buffered']
    #allocation6 [shape = 's32[1]{0}', space=sflag, size = 0x4, scoped, tag = 'scoped memory for tpu_custom_call.1']
    #allocation7 [shape = 'u8[32768]{0}', space=vmem, size = 0x8000, scoped, tag = 'input window, operand 3, single buffered']
    #allocation8 [shape = 'u8[32768]{0}', space=vmem, size = 0x8000, scoped, tag = 'input window, operand 5, single buffered']
    #allocation9 [shape = 's32[1]{0}', space=sflag, size = 0x4, scoped, tag = 'scoped memory for tpu_custom_call.1']
    #allocation10 [shape = 'u8[32768]{0}', space=vmem, size = 0x8000, scoped, tag = 'input window, operand 6, single buffered']
    #allocation11 [shape = 'u8[4096]{0}', space=vmem, size = 0x1000, scoped, tag = 'output window, operand 0, single buffered']
    %12 = vsyncpa [#allocation3], 0
    %13 = vsyncpa [#allocation6], 0
    %14 = vsyncpa [#allocation9], 0
    %15 = vsyncpa [#allocation4], 0
    // Predicated region
    $region2: #{tpu_custom_call.1} parent=1 // pred_check
      _
    $region3: #{tpu_custom_call.1} parent=1 // pred_check_branch
      %17 = sbr.rel (0) target = $region5
    $region4: #{tpu_custom_call.1} parent=1 // pred_region
      %s19 = ssub.s32 64, 64
      %20 = vsyncadd [#allocation3], %s19
      %s22 = sshll.u32 [#allocation2], 4
      %s23 = int_to_ptr.vmem [resolvable:$true] %s22
      %25 = dma.hbm_to_vmem [thread:$0]  %s0, 64, %s23, [#allocation3]
    $region5: #{tpu_custom_call.1} parent=1 // pred_fallthru
      _
    // Predicated region
    $region6: #{tpu_custom_call.1} parent=1 // pred_check
      _
    $region7: #{tpu_custom_call.1} parent=1 // pred_check_branch
      %27 = sbr.rel (0) target = $region9
    $region8: #{tpu_custom_call.1} parent=1 // pred_region
      %s29 = ssub.s32 1024, 1024
      %30 = vsyncadd [#allocation6], %s29
      %s31 = sshll.u32 [#allocation5], 4
      %s32 = int_to_ptr.vmem [resolvable:$true] %s31
      %37 = dma.hbm_to_vmem [thread:$0]  %s1, 1024, %s32, [#allocation6], 64, 64, 4
    $region9: #{tpu_custom_call.1} parent=1 // pred_fallthru
      _
    // Predicated region
    $region10: #{tpu_custom_call.1} parent=1 // pred_check
      _
    $region11: #{tpu_custom_call.1} parent=1 // pred_check_branch
      %39 = sbr.rel (0) target = $region13
    $region12: #{tpu_custom_call.1} parent=1 // pred_region
      _
    $region13: #{tpu_custom_call.1} parent=1 // pred_fallthru
      _
    // Predicated region
    $region14: #{tpu_custom_call.1} parent=1 // pred_check
      _
    $region15: #{tpu_custom_call.1} parent=1 // pred_check_branch
      %41 = sbr.rel (0) target = $region17
    $region16: #{tpu_custom_call.1} parent=1 // pred_region
      %s43 = ssub.s32 1024, 1024
      %44 = vsyncadd [#allocation6], %s43
      %s45 = sshll.u32 [#allocation7], 4
      %s46 = int_to_ptr.vmem [resolvable:$true] %s45
      %51 = dma.hbm_to_vmem [thread:$0]  %s3, 1024, %s46, [#allocation6], 64, 64, 4
    $region17: #{tpu_custom_call.1} parent=1 // pred_fallthru
      _
    // Predicated region
    $region18: #{tpu_custom_call.1} parent=1 // pred_check
      _
    $region19: #{tpu_custom_call.1} parent=1 // pred_check_branch
      %53 = sbr.rel (0) target = $region21
    $region20: #{tpu_custom_call.1} parent=1 // pred_region
      _
    $region21: #{tpu_custom_call.1} parent=1 // pred_fallthru
      _
    // Predicated region
    $region22: #{tpu_custom_call.1} parent=1 // pred_check
      _
    $region23: #{tpu_custom_call.1} parent=1 // pred_check_branch
      %55 = sbr.rel (0) target = $region25
    $region24: #{tpu_custom_call.1} parent=1 // pred_region
      %s57 = ssub.s32 1024, 1024
      %58 = vsyncadd [#allocation9], %s57
      %s59 = sshll.u32 [#allocation8], 4
      %s60 = int_to_ptr.vmem [resolvable:$true] %s59
      %65 = dma.hbm_to_vmem [thread:$0]  %s5, 1024, %s60, [#allocation9], 64, 64, 4
    $region25: #{tpu_custom_call.1} parent=1 // pred_fallthru
      _
    // Predicated region
    $region26: #{tpu_custom_call.1} parent=1 // pred_check
      _
    $region27: #{tpu_custom_call.1} parent=1 // pred_check_branch
      %67 = sbr.rel (0) target = $region29
    $region28: #{tpu_custom_call.1} parent=1 // pred_region
      %s69 = ssub.s32 1024, 1024
      %70 = vsyncadd [#allocation9], %s69
      %s71 = sshll.u32 [#allocation10], 4
      %s72 = int_to_ptr.vmem [resolvable:$true] %s71
      %77 = dma.hbm_to_vmem [thread:$0]  %s6, 1024, %s72, [#allocation9], 64, 64, 4
    $region29: #{tpu_custom_call.1} parent=1 // pred_fallthru
      _
    // Predicated region
    $region30: #{tpu_custom_call.1} parent=1 // pred_check
      _
    $region31: #{tpu_custom_call.1} parent=1 // pred_check_branch
      %79 = sbr.rel (0) target = $region33
    $region32: #{tpu_custom_call.1} parent=1 // pred_region
      %80 = dma.done [#allocation3], 64
    $region33: #{tpu_custom_call.1} parent=1 // pred_fallthru
      _
    // Predicated region
    $region34: #{tpu_custom_call.1} parent=1 // pred_check
      _
    $region35: #{tpu_custom_call.1} parent=1 // pred_check_branch
      %82 = sbr.rel (0) target = $region37
    $region36: #{tpu_custom_call.1} parent=1 // pred_region
      %83 = dma.done [#allocation6], 1024
    $region37: #{tpu_custom_call.1} parent=1 // pred_fallthru
      _
    // Predicated region
    $region38: #{tpu_custom_call.1} parent=1 // pred_check
      _
    $region39: #{tpu_custom_call.1} parent=1 // pred_check_branch
      %85 = sbr.rel (0) target = $region41
    $region40: #{tpu_custom_call.1} parent=1 // pred_region
      %86 = dma.done [#allocation6], 1024
    $region41: #{tpu_custom_call.1} parent=1 // pred_fallthru
      _
    // Predicated region
    $region42: #{tpu_custom_call.1} parent=1 // pred_check
      _
    $region43: #{tpu_custom_call.1} parent=1 // pred_check_branch
      %88 = sbr.rel (0) target = $region45
    $region44: #{tpu_custom_call.1} parent=1 // pred_region
      %89 = dma.done [#allocation9], 1024
    $region45: #{tpu_custom_call.1} parent=1 // pred_fallthru
      _
    // Predicated region
    $region46: #{tpu_custom_call.1} parent=1 // pred_check
      _
    $region47: #{tpu_custom_call.1} parent=1 // pred_check_branch
      %91 = sbr.rel (0) target = $region49
    $region48: #{tpu_custom_call.1} parent=1 // pred_region
      %92 = dma.done [#allocation9], 1024
    $region49: #{tpu_custom_call.1} parent=1 // pred_fallthru
      _
    %v94 = vld [vmem:[#allocation2] sm:$0xf]
    %v95 = vld [vmem:[#allocation5] sm:$0xf]
    %v96 = vld [vmem:[#allocation5 + $0x4] sm:$0xf]
    %v97 = vld [vmem:[#allocation5 + $0x8] sm:$0xf]
    %v98 = vld [vmem:[#allocation5 + $0xc] sm:$0xf]
    %v99 = vld [vmem:[#allocation5 + $0x10] sm:$0xf]
    %v100 = vld [vmem:[#allocation5 + $0x14] sm:$0xf]
    %v101 = vld [vmem:[#allocation5 + $0x18] sm:$0xf]
    %v102 = vld [vmem:[#allocation5 + $0x1c] sm:$0xf]
    %v103 = vld [vmem:[#allocation5 + $0x20] sm:$0xf]
    %v104 = vld [vmem:[#allocation5 + $0x24] sm:$0xf]
    %v105 = vld [vmem:[#allocation5 + $0x28] sm:$0xf]
    %v106 = vld [vmem:[#allocation5 + $0x2c] sm:$0xf]
    %v107 = vld [vmem:[#allocation5 + $0x30] sm:$0xf]
    %v108 = vld [vmem:[#allocation5 + $0x34] sm:$0xf]
    %v109 = vld [vmem:[#allocation5 + $0x38] sm:$0xf]
    %v110 = vld [vmem:[#allocation5 + $0x3c] sm:$0xf]
    %v111 = vld [vmem:[%s2] sm:$0x1]
    %v113 = vlaneseq
    %v114 = vshrl.u32 %v113, 7
    %v115 = vsub.s32 0, %v114
    %v116 = vrot.slane %v111, %v115
    %v134 = vunpack.c.l.b16 %v95
    %v135 = vunpack.c.l.b16 %v96
    %v136 = vunpack.c.l.b16 %v97
    %v137 = vunpack.c.l.b16 %v98
    %v138 = vunpack.c.l.b16 %v99
    %v139 = vunpack.c.l.b16 %v100
    %v140 = vunpack.c.l.b16 %v101
    %v141 = vunpack.c.l.b16 %v102
    %v142 = vunpack.c.l.b16 %v103
    %v143 = vunpack.c.l.b16 %v104
    %v144 = vunpack.c.l.b16 %v105
    %v145 = vunpack.c.l.b16 %v106
    %v146 = vunpack.c.l.b16 %v107
    %v147 = vunpack.c.l.b16 %v108
    %v148 = vunpack.c.l.b16 %v109
    %v149 = vunpack.c.l.b16 %v110
    %v150 = vpack.c.b16 %v135, %v134
    %v151 = vpack.c.b16 %v137, %v136
    %v152 = vpack.c.b16 %v139, %v138
    %v153 = vpack.c.b16 %v141, %v140
    %v154 = vpack.c.b16 %v143, %v142
    %v155 = vpack.c.b16 %v145, %v144
    %v156 = vpack.c.b16 %v147, %v146
    %v157 = vpack.c.b16 %v149, %v148
    %166 = vmatprep.subr.bf16.mxu0 0
    %167 = vmatpush1.bf16.msra.mxu0 %v157
    %168 = vmatprep.subr.bf16.mxu0 0
    %169 = vmatpush1.bf16.msra.mxu0 %v156
    %170 = vmatprep.subr.bf16.mxu0 0
    %171 = vmatpush1.bf16.msra.mxu0 %v155
    %172 = vmatprep.subr.bf16.mxu0 0
    %173 = vmatpush1.bf16.msra.mxu0 %v154
    %174 = vmatprep.subr.bf16.mxu0 0
    %175 = vmatpush1.bf16.msra.mxu0 %v153
    %176 = vmatprep.subr.bf16.mxu0 0
    %177 = vmatpush1.bf16.msra.mxu0 %v152
    %178 = vmatprep.subr.bf16.mxu0 0
    %179 = vmatpush1.bf16.msra.mxu0 %v151
    %180 = vmatprep.subr.bf16.mxu0 0
    %181 = vmatpush1.bf16.msra.mxu0 %v150
    %182 = vmatprep.subr.bf16.mxu0 0
    %183 = vmatpush2.bf16.msra.mxu0 0
    %184 = vmatprep.subr.bf16.mxu0 0
    %185 = vmatpush2.bf16.msra.mxu0 0
    %186 = vmatprep.subr.bf16.mxu0 0
    %187 = vmatpush2.bf16.msra.mxu0 0
    %188 = vmatprep.subr.bf16.mxu0 0
    %189 = vmatpush2.bf16.msra.mxu0 0
    %190 = vmatprep.subr.bf16.mxu0 0
    %191 = vmatpush2.bf16.msra.mxu0 0
    %192 = vmatprep.subr.bf16.mxu0 0
    %193 = vmatpush2.bf16.msra.mxu0 0
    %194 = vmatprep.subr.bf16.mxu0 0
    %195 = vmatpush2.bf16.msra.mxu0 0
    %196 = vmatprep.subr.bf16.mxu0 0
    %197 = vmatpush2.bf16.msra.mxu0 0
    %198 = vmatprep.mubr.bf16.mxu0 0
    %199 = vmatmul.mubr.bf16.gmra.mxu0 %v94
    %v200 = vpop.f32.mrf.mxu0
    %v201 = vadd.f32 %v116, %v200
    %v202 = vpop.f32.mrf.mxu0
    %v203 = vpop.f32.mrf.mxu0
    %v204 = vpop.f32.mrf.mxu0
    %205 = vdwg.mxu0
    %v206 = vtanh.pop %v201
    %v207 = vpack.c.bf16 %v206, %v206
    %v208 = vld [vmem:[#allocation7] sm:$0xf]
    %v209 = vld [vmem:[#allocation7 + $0x4] sm:$0xf]
    %v210 = vld [vmem:[#allocation7 + $0x8] sm:$0xf]
    %v211 = vld [vmem:[#allocation7 + $0xc] sm:$0xf]
    %v212 = vld [vmem:[#allocation7 + $0x10] sm:$0xf]
    %v213 = vld [vmem:[#allocation7 + $0x14] sm:$0xf]
    %v214 = vld [vmem:[#allocation7 + $0x18] sm:$0xf]
    %v215 = vld [vmem:[#allocation7 + $0x1c] sm:$0xf]
    %v216 = vld [vmem:[#allocation7 + $0x20] sm:$0xf]
    %v217 = vld [vmem:[#allocation7 + $0x24] sm:$0xf]
    %v218 = vld [vmem:[#allocation7 + $0x28] sm:$0xf]
    %v219 = vld [vmem:[#allocation7 + $0x2c] sm:$0xf]
    %v220 = vld [vmem:[#allocation7 + $0x30] sm:$0xf]
    %v221 = vld [vmem:[#allocation7 + $0x34] sm:$0xf]
    %v222 = vld [vmem:[#allocation7 + $0x38] sm:$0xf]
    %v223 = vld [vmem:[#allocation7 + $0x3c] sm:$0xf]
    %v224 = vld [vmem:[%s4] sm:$0x1]
    %v226 = vlaneseq
    %v227 = vshrl.u32 %v226, 7
    %v228 = vsub.s32 0, %v227
    %v229 = vrot.slane %v224, %v228
    %v247 = vunpack.c.l.b16 %v208
    %v248 = vunpack.c.l.b16 %v209
    %v249 = vunpack.c.l.b16 %v210
    %v250 = vunpack.c.l.b16 %v211
    %v251 = vunpack.c.l.b16 %v212
    %v252 = vunpack.c.l.b16 %v213
    %v253 = vunpack.c.l.b16 %v214
    %v254 = vunpack.c.l.b16 %v215
    %v255 = vunpack.c.l.b16 %v216
    %v256 = vunpack.c.l.b16 %v217
    %v257 = vunpack.c.l.b16 %v218
    %v258 = vunpack.c.l.b16 %v219
    %v259 = vunpack.c.l.b16 %v220
    %v260 = vunpack.c.l.b16 %v221
    %v261 = vunpack.c.l.b16 %v222
    %v262 = vunpack.c.l.b16 %v223
    %v263 = vpack.c.b16 %v248, %v247
    %v264 = vpack.c.b16 %v250, %v249
    %v265 = vpack.c.b16 %v252, %v251
    %v266 = vpack.c.b16 %v254, %v253
    %v267 = vpack.c.b16 %v256, %v255
    %v268 = vpack.c.b16 %v258, %v257
    %v269 = vpack.c.b16 %v260, %v259
    %v270 = vpack.c.b16 %v262, %v261
    %279 = vmatprep.subr.bf16.mxu0 0
    %280 = vmatpush1.bf16.msra.mxu0 %v270
    %281 = vmatprep.subr.bf16.mxu0 0
    %282 = vmatpush1.bf16.msra.mxu0 %v269
    %283 = vmatprep.subr.bf16.mxu0 0
    %284 = vmatpush1.bf16.msra.mxu0 %v268
    %285 = vmatprep.subr.bf16.mxu0 0
    %286 = vmatpush1.bf16.msra.mxu0 %v267
    %287 = vmatprep.subr.bf16.mxu0 0
    %288 = vmatpush1.bf16.msra.mxu0 %v266
    %289 = vmatprep.subr.bf16.mxu0 0
    %290 = vmatpush1.bf16.msra.mxu0 %v265
    %291 = vmatprep.subr.bf16.mxu0 0
    %292 = vmatpush1.bf16.msra.mxu0 %v264
    %293 = vmatprep.subr.bf16.mxu0 0
    %294 = vmatpush1.bf16.msra.mxu0 %v263
    %295 = vmatprep.subr.bf16.mxu0 0
    %296 = vmatpush2.bf16.msra.mxu0 0
    %297 = vmatprep.subr.bf16.mxu0 0
    %298 = vmatpush2.bf16.msra.mxu0 0
    %299 = vmatprep.subr.bf16.mxu0 0
    %300 = vmatpush2.bf16.msra.mxu0 0
    %301 = vmatprep.subr.bf16.mxu0 0
    %302 = vmatpush2.bf16.msra.mxu0 0
    %303 = vmatprep.subr.bf16.mxu0 0
    %304 = vmatpush2.bf16.msra.mxu0 0
    %305 = vmatprep.subr.bf16.mxu0 0
    %306 = vmatpush2.bf16.msra.mxu0 0
    %307 = vmatprep.subr.bf16.mxu0 0
    %308 = vmatpush2.bf16.msra.mxu0 0
    %309 = vmatprep.subr.bf16.mxu0 0
    %310 = vmatpush2.bf16.msra.mxu0 0
    %311 = vmatprep.mubr.bf16.mxu0 0
    %312 = vmatmul.mubr.bf16.gmra.mxu0 %v207
    %v313 = vpop.f32.mrf.mxu0
    %v314 = vadd.f32 %v229, %v313
    %v315 = vpop.f32.mrf.mxu0
    %v316 = vpop.f32.mrf.mxu0
    %v317 = vpop.f32.mrf.mxu0
    %318 = vdwg.mxu0
    %v319 = vtanh.pop %v314
    %v320 = vmul.f32 %v319, %v319
    %v321 = vsub.f32 1.0, %v320
    %v322 = vpack.c.bf16 %v321, %v321
    %v323 = vld [vmem:[#allocation8] sm:$0xf]
    %v324 = vld [vmem:[#allocation8 + $0x4] sm:$0xf]
    %v325 = vld [vmem:[#allocation8 + $0x8] sm:$0xf]
    %v326 = vld [vmem:[#allocation8 + $0xc] sm:$0xf]
    %v327 = vld [vmem:[#allocation8 + $0x10] sm:$0xf]
    %v328 = vld [vmem:[#allocation8 + $0x14] sm:$0xf]
    %v329 = vld [vmem:[#allocation8 + $0x18] sm:$0xf]
    %v330 = vld [vmem:[#allocation8 + $0x1c] sm:$0xf]
    %v331 = vld [vmem:[#allocation8 + $0x20] sm:$0xf]
    %v332 = vld [vmem:[#allocation8 + $0x24] sm:$0xf]
    %v333 = vld [vmem:[#allocation8 + $0x28] sm:$0xf]
    %v334 = vld [vmem:[#allocation8 + $0x2c] sm:$0xf]
    %v335 = vld [vmem:[#allocation8 + $0x30] sm:$0xf]
    %v336 = vld [vmem:[#allocation8 + $0x34] sm:$0xf]
    %v337 = vld [vmem:[#allocation8 + $0x38] sm:$0xf]
    %v338 = vld [vmem:[#allocation8 + $0x3c] sm:$0xf]
    %v355 = vunpack.c.l.b16 %v323
    %v356 = vunpack.c.l.b16 %v324
    %v357 = vunpack.c.l.b16 %v325
    %v358 = vunpack.c.l.b16 %v326
    %v359 = vunpack.c.l.b16 %v327
    %v360 = vunpack.c.l.b16 %v328
    %v361 = vunpack.c.l.b16 %v329
    %v362 = vunpack.c.l.b16 %v330
    %v363 = vunpack.c.l.b16 %v331
    %v364 = vunpack.c.l.b16 %v332
    %v365 = vunpack.c.l.b16 %v333
    %v366 = vunpack.c.l.b16 %v334
    %v367 = vunpack.c.l.b16 %v335
    %v368 = vunpack.c.l.b16 %v336
    %v369 = vunpack.c.l.b16 %v337
    %v370 = vunpack.c.l.b16 %v338
    %v371 = vpack.c.b16 %v356, %v355
    %v372 = vpack.c.b16 %v358, %v357
    %v373 = vpack.c.b16 %v360, %v359
    %v374 = vpack.c.b16 %v362, %v361
    %v375 = vpack.c.b16 %v364, %v363
    %v376 = vpack.c.b16 %v366, %v365
    %v377 = vpack.c.b16 %v368, %v367
    %v378 = vpack.c.b16 %v370, %v369
    %387 = vmatprep.subr.bf16.mxu0 0
    %388 = vmatpush1.bf16.msra.mxu0 %v378
    %389 = vmatprep.subr.bf16.mxu0 0
    %390 = vmatpush1.bf16.msra.mxu0 %v377
    %391 = vmatprep.subr.bf16.mxu0 0
    %392 = vmatpush1.bf16.msra.mxu0 %v376
    %393 = vmatprep.subr.bf16.mxu0 0
    %394 = vmatpush1.bf16.msra.mxu0 %v375
    %395 = vmatprep.subr.bf16.mxu0 0
    %396 = vmatpush1.bf16.msra.mxu0 %v374
    %397 = vmatprep.subr.bf16.mxu0 0
    %398 = vmatpush1.bf16.msra.mxu0 %v373
    %399 = vmatprep.subr.bf16.mxu0 0
    %400 = vmatpush1.bf16.msra.mxu0 %v372
    %401 = vmatprep.subr.bf16.mxu0 0
    %402 = vmatpush1.bf16.msra.mxu0 %v371
    %403 = vmatprep.subr.bf16.mxu0 0
    %404 = vmatpush2.bf16.msra.mxu0 0
    %405 = vmatprep.subr.bf16.mxu0 0
    %406 = vmatpush2.bf16.msra.mxu0 0
    %407 = vmatprep.subr.bf16.mxu0 0
    %408 = vmatpush2.bf16.msra.mxu0 0
    %409 = vmatprep.subr.bf16.mxu0 0
    %410 = vmatpush2.bf16.msra.mxu0 0
    %411 = vmatprep.subr.bf16.mxu0 0
    %412 = vmatpush2.bf16.msra.mxu0 0
    %413 = vmatprep.subr.bf16.mxu0 0
    %414 = vmatpush2.bf16.msra.mxu0 0
    %415 = vmatprep.subr.bf16.mxu0 0
    %416 = vmatpush2.bf16.msra.mxu0 0
    %417 = vmatprep.subr.bf16.mxu0 0
    %418 = vmatpush2.bf16.msra.mxu0 0
    %419 = vmatprep.mubr.bf16.mxu0 0
    %420 = vmatmul.mubr.bf16.gmra.mxu0 %v322
    %v421 = vpop.f32.mrf.mxu0
    %v422 = vadd.f32 0.0, %v421
    %v423 = vpop.f32.mrf.mxu0
    %v424 = vpop.f32.mrf.mxu0
    %v425 = vpop.f32.mrf.mxu0
    %426 = vdwg.mxu0
    %v427 = vmul.f32 %v206, %v206
    %v428 = vsub.f32 1.0, %v427
    %v429 = vmul.f32 %v422, %v428
    %v430 = vpack.c.bf16 %v429, %v429
    %v431 = vld [vmem:[#allocation10] sm:$0xf]
    %v432 = vld [vmem:[#allocation10 + $0x4] sm:$0xf]
    %v433 = vld [vmem:[#allocation10 + $0x8] sm:$0xf]
    %v434 = vld [vmem:[#allocation10 + $0xc] sm:$0xf]
    %v435 = vld [vmem:[#allocation10 + $0x10] sm:$0xf]
    %v436 = vld [vmem:[#allocation10 + $0x14] sm:$0xf]
    %v437 = vld [vmem:[#allocation10 + $0x18] sm:$0xf]
    %v438 = vld [vmem:[#allocation10 + $0x1c] sm:$0xf]
    %v439 = vld [vmem:[#allocation10 + $0x20] sm:$0xf]
    %v440 = vld [vmem:[#allocation10 + $0x24] sm:$0xf]
    %v441 = vld [vmem:[#allocation10 + $0x28] sm:$0xf]
    %v442 = vld [vmem:[#allocation10 + $0x2c] sm:$0xf]
    %v443 = vld [vmem:[#allocation10 + $0x30] sm:$0xf]
    %v444 = vld [vmem:[#allocation10 + $0x34] sm:$0xf]
    %v445 = vld [vmem:[#allocation10 + $0x38] sm:$0xf]
    %v446 = vld [vmem:[#allocation10 + $0x3c] sm:$0xf]
    %v463 = vunpack.c.l.b16 %v431
    %v464 = vunpack.c.l.b16 %v432
    %v465 = vunpack.c.l.b16 %v433
    %v466 = vunpack.c.l.b16 %v434
    %v467 = vunpack.c.l.b16 %v435
    %v468 = vunpack.c.l.b16 %v436
    %v469 = vunpack.c.l.b16 %v437
    %v470 = vunpack.c.l.b16 %v438
    %v471 = vunpack.c.l.b16 %v439
    %v472 = vunpack.c.l.b16 %v440
    %v473 = vunpack.c.l.b16 %v441
    %v474 = vunpack.c.l.b16 %v442
    %v475 = vunpack.c.l.b16 %v443
    %v476 = vunpack.c.l.b16 %v444
    %v477 = vunpack.c.l.b16 %v445
    %v478 = vunpack.c.l.b16 %v446
    %v479 = vpack.c.b16 %v464, %v463
    %v480 = vpack.c.b16 %v466, %v465
    %v481 = vpack.c.b16 %v468, %v467
    %v482 = vpack.c.b16 %v470, %v469
    %v483 = vpack.c.b16 %v472, %v471
    %v484 = vpack.c.b16 %v474, %v473
    %v485 = vpack.c.b16 %v476, %v475
    %v486 = vpack.c.b16 %v478, %v477
    %495 = vmatprep.subr.bf16.mxu0 0
    %496 = vmatpush1.bf16.msra.mxu0 %v486
    %497 = vmatprep.subr.bf16.mxu0 0
    %498 = vmatpush1.bf16.msra.mxu0 %v485
    %499 = vmatprep.subr.bf16.mxu0 0
    %500 = vmatpush1.bf16.msra.mxu0 %v484
    %501 = vmatprep.subr.bf16.mxu0 0
    %502 = vmatpush1.bf16.msra.mxu0 %v483
    %503 = vmatprep.subr.bf16.mxu0 0
    %504 = vmatpush1.bf16.msra.mxu0 %v482
    %505 = vmatprep.subr.bf16.mxu0 0
    %506 = vmatpush1.bf16.msra.mxu0 %v481
    %507 = vmatprep.subr.bf16.mxu0 0
    %508 = vmatpush1.bf16.msra.mxu0 %v480
    %509 = vmatprep.subr.bf16.mxu0 0
    %510 = vmatpush1.bf16.msra.mxu0 %v479
    %511 = vmatprep.subr.bf16.mxu0 0
    %512 = vmatpush2.bf16.msra.mxu0 0
    %513 = vmatprep.subr.bf16.mxu0 0
    %514 = vmatpush2.bf16.msra.mxu0 0
    %515 = vmatprep.subr.bf16.mxu0 0
    %516 = vmatpush2.bf16.msra.mxu0 0
    %517 = vmatprep.subr.bf16.mxu0 0
    %518 = vmatpush2.bf16.msra.mxu0 0
    %519 = vmatprep.subr.bf16.mxu0 0
    %520 = vmatpush2.bf16.msra.mxu0 0
    %521 = vmatprep.subr.bf16.mxu0 0
    %522 = vmatpush2.bf16.msra.mxu0 0
    %523 = vmatprep.subr.bf16.mxu0 0
    %524 = vmatpush2.bf16.msra.mxu0 0
    %525 = vmatprep.subr.bf16.mxu0 0
    %526 = vmatpush2.bf16.msra.mxu0 0
    %527 = vmatprep.mubr.bf16.mxu0 0
    %528 = vmatmul.mubr.bf16.gmra.mxu0 %v430
    %v529 = vpop.f32.mrf.mxu0
    %v530 = vadd.f32 0.0, %v529
    %v531 = vpop.f32.mrf.mxu0
    %v532 = vpop.f32.mrf.mxu0
    %v533 = vpop.f32.mrf.mxu0
    %534 = vdwg.mxu0
    %v535 = vsub.f32 0.0, %v530
    %536 = vst [vmem:[#allocation11] sm:$0xff] %v535
    // Predicated region
    $region50: #{tpu_custom_call.1} parent=1 // pred_check
      _
    $region51: #{tpu_custom_call.1} parent=1 // pred_check_branch
      %538 = sbr.rel (0) target = $region53
    $region52: #{tpu_custom_call.1} parent=1 // pred_region
      %s540 = ssub.s32 128, 128
      %541 = vsyncadd [#allocation4], %s540
      %s543 = sshll.u32 [#allocation11], 4
      %s544 = int_to_ptr.vmem [resolvable:$true] %s543
      %546 = dma.vmem_to_hbm [thread:$0]  %s544, 128, %s7, [#allocation4]
    $region53: #{tpu_custom_call.1} parent=1 // pred_fallthru
      _
    // Predicated region
    $region54: #{tpu_custom_call.1} parent=1 // pred_check
      _
    $region55: #{tpu_custom_call.1} parent=1 // pred_check_branch
      %548 = sbr.rel (0) target = $region57
    $region56: #{tpu_custom_call.1} parent=1 // pred_region
      %549 = dma.done [#allocation4], 128
    $region57: #{tpu_custom_call.1} parent=1 // pred_fallthru
      _
    %550 = vsyncpa [#allocation3], 1
    %551 = vsyncpa [#allocation6], 1
    %552 = vsyncpa [#allocation9], 1
    %553 = vsyncpa [#allocation4], 1

</llo_original>
